<compile_context>
chip_gen: v7x
topology: tpu7x:2x2x1
jax: 0.10.0
libtpu: 0.0.40
codegen_flags: <defaults>
</compile_context>

<pallas_src>
import jax
import jax.numpy as jnp
from jax.experimental import pallas as pl
from jax.experimental.pallas import tpu as pltpu

_LANE = 128
_PALLAS_MIN_BYTES = 256 * 1024        # below this, plain swapaxes / fusion wins
_MAX_TC_TILE = 512                    # C tile width when C is too wide for a full-C block


def _round_up(n: int, m: int) -> int:
    return ((n + m - 1) // m) * m


def _per_gen_vmem():
    """Return (tile_budget_bytes, vmem_limit_bytes) tuned per TPU generation."""
    cap = None
    try:
        info = pltpu.get_tpu_info()
        cap = int(getattr(info, "vmem_capacity_bytes", 0)) or None
    except Exception:
        cap = None
    if cap is None:
        cap = 64 * 1024 * 1024                      # conservative (v7x-sized VMEM)
    if cap > 96 * 1024 * 1024:                      # v5e / v6e: 128 MiB physical VMEM
        return 16 * 1024 * 1024, 64 * 1024 * 1024
    # v7x: only 64 MiB per TensorCore -> keep budget + scoped limit well under it.
    return 12 * 1024 * 1024, 40 * 1024 * 1024


def _transpose_last2_kernel(x_ref, o_ref):
    # x_ref: (1, tc, tl) VMEM tile  ->  o_ref: (1, tl, tc) VMEM tile.
    # Pure XLU transpose in the storage dtype (no upcast, no VALU work).
    o_ref[...] = jnp.transpose(x_ref[...], (0, 2, 1))


def _choose_tiles(B, C, L, itemsize, budget):
    """Pick (tc, num_c, tl, num_l) so 4 live double-buffered tiles fit `budget`."""
    # DMA-efficiency floor: each strided input row chunk (tl * itemsize) >= 2 KiB.
    min_tl = max(_LANE, _round_up(2048 // itemsize, _LANE))

    # Prefer a full-C block (one fully contiguous, lane-dense output slab per
    # tile) unless that would squeeze the L tile below the DMA floor or blow
    # the budget for very wide C.
    tl_full_c = (budget // (4 * C * itemsize)) // _LANE * _LANE
    if C <= _MAX_TC_TILE or tl_full_c >= min(min_tl, _round_up(L, _LANE)):
        tc, num_c = C, 1                             # full dim -> always legal
        tl = max(tl_full_c, _LANE)
    else:
        tc = _MAX_TC_TILE                            # multiple of 128: legal as input
        num_c = pl.cdiv(C, tc)                       #   sublane dim and output lane dim
        tl = max((budget // (4 * tc * itemsize)) // _LANE * _LANE, min_tl)

    if tl >= L:
        tl, num_l = L, 1                             # full-dim block: legal for any L
    else:
        num_l = pl.cdiv(L, tl)                       # ragged tail masked by Pallas

    # Keep both v7x TensorCores busy: never emit a 1-step grid when an axis
    # can be split into two >=128-wide blocks (costs one extra ~0.35us step).
    if B * num_c * num_l == 1:
        if L > _LANE:
            tl = _round_up(pl.cdiv(L, 2), _LANE)
            num_l = pl.cdiv(L, tl)
        elif C > _LANE:
            tc = _round_up(pl.cdiv(C, 2), _LANE)
            num_c = pl.cdiv(C, tc)
    return tc, num_c, tl, num_l


def _transpose_blc(x, tile_budget_bytes=None):
    """(B, C, L) -> (B, L, C) via a tiled Pallas kernel (no wrapper pad/slice)."""
    B, C, L = x.shape
    itemsize = jnp.dtype(x.dtype).itemsize
    budget, vmem_limit = _per_gen_vmem()
    if tile_budget_bytes is not None:
        budget = tile_budget_bytes

    tc, num_c, tl, num_l = _choose_tiles(B, C, L, itemsize, budget)

    return pl.pallas_call(
        _transpose_last2_kernel,
        out_shape=jax.ShapeDtypeStruct((B, L, C), x.dtype),
        grid_spec=pltpu.PrefetchScalarGridSpec(
            num_scalar_prefetch=0,
            grid=(B, num_c, num_l),
            in_specs=[pl.BlockSpec((1, tc, tl), lambda b, c, l: (b, c, l))],
            out_specs=pl.BlockSpec((1, tl, tc), lambda b, c, l: (b, l, c)),
        ),
        compiler_params=pltpu.CompilerParams(
            # All three grid axes are fully independent -> shard across
            # TensorCores (matters on v7x with 2 TCs per chip).
            dimension_semantics=("parallel", "parallel", "parallel"),
            vmem_limit_bytes=vmem_limit,
        ),
        # Pure data movement: advise XLA this call is bandwidth-bound.
        cost_estimate=pl.CostEstimate(
            flops=0,
            transcendentals=0,
            bytes_accessed=2 * B * C * L * itemsize,
        ),
    )(x)


def pallas_transpose(x, dim0: int, dim1: int):
    """Pallas equivalent of torch.Tensor.transpose(dim0, dim1)."""
    ndim = x.ndim
    d0 = dim0 % ndim
    d1 = dim1 % ndim
    if d0 == d1:
        return x
    if (ndim == 3 and {d0, d1} == {1, 2}
            and x.size * jnp.dtype(x.dtype).itemsize >= _PALLAS_MIN_BYTES):
        return _transpose_blc(x)
    # Small tensors: pallas_call launch + per-step overhead and <128-lane
    # masked stores dominate; plain XLA relayout (or fusing the transpose into
    # the consumer matmul) is the right call there.
    # TODO(synk): general N-D / non-(1,2)-axis transposes fall back to XLA.
    perm = list(range(ndim))
    perm[d0], perm[d1] = perm[d1], perm[d0]
    return jnp.transpose(x, perm)


class TransposePallas:
    """Mirror of the PyTorch `Transpose` Sequential wrapper (no parameters)."""

    def __init__(self, shape: tuple):
        self.shape = shape

    def __call__(self, x):
        return pallas_transpose(x, *self.shape)


if __name__ == "__main__":
    module = TransposePallas((1, 2))

    # Case 1: tiny attention hot-path shape -> small-tensor fallback path.
    B, C, L = 2, 8, 32
    x = jax.random.normal(jax.random.PRNGKey(0), (B, C, L), dtype=jnp.float32)
    y = jax.block_until_ready(module(x))
    assert y.shape == (B, L, C), y.shape
    assert y.dtype == x.dtype, y.dtype
    assert jnp.array_equal(y, jnp.swapaxes(x, 1, 2)), "mismatch (fallback path)"

    # Case 2: Pallas path, full-C / full-L blocks (no padding, no slicing).
    B2, C2, L2 = 2, 192, 200          # ~300 KiB f32 -> above fallback threshold
    x2 = jax.random.normal(jax.random.PRNGKey(1), (B2, C2, L2), dtype=jnp.float32)
    y2 = jax.block_until_ready(module(x2))
    assert y2.shape == (B2, L2, C2), y2.shape
    assert jnp.array_equal(y2, jnp.swapaxes(x2, 1, 2)), "mismatch (full-block path)"

    # Case 3: force ragged L tiling (masked partial last L block, tl=128).
    y3 = jax.block_until_ready(
        _transpose_blc(x2, tile_budget_bytes=4 * 192 * 128 * 4))
    assert jnp.array_equal(y3, jnp.swapaxes(x2, 1, 2)), "mismatch (ragged-L path)"

    # Case 4: force C tiling with a ragged C tail (tc=512 over C=640).
    B4, C4, L4 = 1, 640, 200
    x4 = jax.random.normal(jax.random.PRNGKey(2), (B4, C4, L4), dtype=jnp.float32)
    y4 = jax.block_until_ready(
        _transpose_blc(x4, tile_budget_bytes=4 * 640 * 128 * 4))
    assert jnp.array_equal(y4, jnp.swapaxes(x4, 1, 2)), "mismatch (tiled-C path)"

    # Case 5: single-tile shape -> forced 2-step split along L (v7x 2-TC path).
    B5, C5, L5 = 1, 192, 400
    x5 = jax.random.normal(jax.random.PRNGKey(3), (B5, C5, L5), dtype=jnp.float32)
    y5 = jax.block_until_ready(_transpose_blc(x5))
    assert jnp.array_equal(y5, jnp.swapaxes(x5, 1, 2)), "mismatch (split path)"

    print("KERNEL_OK")
</pallas_src>

<mosaic_0001>
module attributes {stable_mosaic.version = 11 : i64} {
  func.func @_transpose_last2_kernel(%arg0: i32, %arg1: i32, %arg2: i32, %arg3: memref<1x192x200xf32, #tpu.memory_space<vmem>>, %arg4: memref<1x200x192xf32, #tpu.memory_space<vmem>>) attributes {dimension_semantics = [#tpu.dimension_semantics<parallel>, #tpu.dimension_semantics<parallel>, #tpu.dimension_semantics<parallel>], iteration_bounds = array<i64: 2, 1, 1>, scalar_prefetch = 0 : i64, scratch_operands = 0 : i64, tpu.core_type = #tpu.core_type<tc>, window_params = [{transform_indices = @transform_0, window_bounds = array<i64: 1, 192, 200>}, {transform_indices = @transform_1, window_bounds = array<i64: 1, 200, 192>}]} {
    %c0 = arith.constant 0 : index
    %c0_0 = arith.constant 0 : index
    %c0_1 = arith.constant 0 : index
    %0 = vector.load %arg3[%c0, %c0_0, %c0_1] : memref<1x192x200xf32, #tpu.memory_space<vmem>>, vector<1x192x200xf32>
    %1 = tpu.transpose %0, [0, 2, 1] : vector<1x192x200xf32> -> vector<1x200x192xf32>
    %c0_2 = arith.constant 0 : index
    %c0_3 = arith.constant 0 : index
    %c0_4 = arith.constant 0 : index
    %2 = vector.load %arg4[%c0_2, %c0_3, %c0_4] : memref<1x200x192xf32, #tpu.memory_space<vmem>>, vector<1x200x192xf32>
    tpu.vector_store %arg4[%c0_2, %c0_3, %c0_4], %1 {strides = array<i32>} : memref<1x200x192xf32, #tpu.memory_space<vmem>>, vector<1x200x192xf32>,
    return
  }
  func.func @transform_0(%arg0: i32, %arg1: i32, %arg2: i32) -> (i32, i32, i32) {
    %c0_i32 = arith.constant 0 : i32
    return %arg0, %arg1, %arg2 : i32, i32, i32
  }
  func.func @transform_1(%arg0: i32, %arg1: i32, %arg2: i32) -> (i32, i32, i32) {
    %c0_i32 = arith.constant 0 : i32
    return %arg0, %arg2, %arg1 : i32, i32, i32
  }
}

</mosaic_0001>

<llo_original>
// kernel: tpu_custom_call.1
$region0: #{tpu_custom_call.1}
  #allocation0 [shape = 'u32[]', space=smem, size = 0x4, offset = 0x4, fixed_abs, tag = 'smem constant byte address 0x4 - core index']
  #allocation1 [shape = 'u32[144,128]{1,0:T(1,128)}', space=vmem, size = 0x12000, scoped, tag = 'internal scratch']
  %s0 = inlined_call_operand.hbm [shape: f32[2,192,200], index: 0, kind: input, shape index: {}]
  %s1 = inlined_call_operand.vmem [shape: f32[2,200,192], index: 1, kind: output, shape index: {}]
  %s2 = sld [smem:[#allocation0]]
  $region41: #{tpu_custom_call.1} parent=0
    _
  %s4 = ssub.s32 1, %s2
  %s5 = scalar_select 0, %s4, %s2
  $region1: #{tpu_custom_call.1} parent=0
    #allocation2 [shape = 'u8[393216]{0}', space=vmem, size = 0x60000, scoped, tag = 'input window, operand 0']
    #allocation3 [shape = 's32[2]{0}', space=sflag, size = 0x8, scoped, tag = 'scoped memory for tpu_custom_call.1']
    %6 = vsyncpa [#allocation3], 0
    %s7 = scalar_lea.sflag [#allocation3], 1
    %8 = vsyncpa %s7, 0
    loop: start=0, step=1, limit=4
    $region2: #{tpu_custom_call.1} parent=1 // loop_pre_header
      _
    $region3: #{tpu_custom_call.1} parent=1 // loop_header
      %s10 = sphi 0, %s14
      %p11 = scmp.ge.s32.totalorder %s10, 4
      %s17 = sphi 0, %s36
      %s18 = sphi 0, %s32
      %s19 = sphi 0, %s28
      %s20 = sphi 0, %s17
      %s21 = sphi 0, %s18
      %s22 = sphi 0, %s19
      %s23 = sphi 0, %s20
      %s24 = sphi 0, %s21
      %s25 = sphi 0, %s22
      %s43 = sphi 0, %s45
      %s46 = sphi 0, %s43
      %s47 = sphi 0, %s46
      %s63 = sphi 0, %s47
      %s73 = sphi 0, %s75
      %s76 = sphi 0, %s73
      %s77 = sphi 0, %s76
      %s93 = sphi 0, %s77
    $region4: #{tpu_custom_call.1} parent=1 // loop_header_branch
      %13 = sbr.rel (%p11) target = $region8
    $region5: #{tpu_custom_call.1} parent=1 // loop_body
      %s15 = ssub.s32 %s10, 1
      %s16 = ssub.s32 %s10, 2
      %s26 = sadd.s32 1, %s19
      %p27 = scmp.ge.s32.totalorder %s26, 1
      %s28 = scalar_select %p27, 0, %s26
      %s29 = sadd.s32 1, %s18
      %s30 = scalar_select %p27, %s29, %s18
      %p31 = scmp.ge.s32.totalorder %s30, 1
      %s32 = scalar_select %p31, 0, %s30
      %s33 = sadd.s32 1, %s17
      %s34 = scalar_select %p31, %s33, %s17
      %p35 = scmp.ge.s32.totalorder %s34, 2
      %s36 = scalar_select %p35, 0, %s34
      %s37 = ssub.s32 %s17, %s36
      %s38 = ssub.s32 %s18, %s32
      %s39 = sor.u32 %s37, %s38
      %s40 = ssub.s32 %s19, %s28
      %s41 = sor.u32 %s39, %s40
      %p42 = scmp.eq.s32.totalorder %s41, 0
      %s44 = sadd.s32 %s43, 1
      %s45 = scalar_select %p42, %s43, %s44
      %p48 = pneg %p42
      %p49 = scmp.eq.s32.totalorder %s10, 1
      %p50 = por %p48, %p49
      %p51 = scmp.ne.s32.totalorder %s43, %s46
      %p52 = scmp.eq.s32.totalorder %s10, 0
      %p53 = por %p51, %p52
      %p54 = scmp.ne.s32.totalorder %s43, %s46
      %p55 = scmp.eq.s32.totalorder %s15, 1
      %p56 = por %p54, %p55
      %p57 = scmp.ne.s32.totalorder %s46, %s47
      %p58 = scmp.eq.s32.totalorder %s15, 0
      %p59 = por %p57, %p58
      %p60 = scmp.ne.s32.totalorder %s46, %s47
      %p61 = scmp.eq.s32.totalorder %s16, 1
      %p62 = por %p60, %p61
      %p64 = scmp.ne.s32.totalorder %s47, %s63
      %p65 = scmp.eq.s32.totalorder %s16, 0
      %p66 = por %p64, %p65
      %s67 = ssub.s32 %s17, %s36
      %s68 = ssub.s32 %s19, %s28
      %s69 = sor.u32 %s67, %s68
      %s70 = ssub.s32 %s18, %s32
      %s71 = sor.u32 %s69, %s70
      %p72 = scmp.eq.s32.totalorder %s71, 0
      %s74 = sadd.s32 %s73, 1
      %s75 = scalar_select %p72, %s73, %s74
      %p78 = pneg %p72
      %p79 = scmp.eq.s32.totalorder %s10, 1
      %p80 = por %p78, %p79
      %p81 = scmp.ne.s32.totalorder %s73, %s76
      %p82 = scmp.eq.s32.totalorder %s10, 0
      %p83 = por %p81, %p82
      %p84 = scmp.ne.s32.totalorder %s73, %s76
      %p85 = scmp.eq.s32.totalorder %s15, 1
      %p86 = por %p84, %p85
      %p87 = scmp.ne.s32.totalorder %s76, %s77
      %p88 = scmp.eq.s32.totalorder %s15, 0
      %p89 = por %p87, %p88
      %p90 = scmp.ne.s32.totalorder %s76, %s77
      %p91 = scmp.eq.s32.totalorder %s16, 1
      %p92 = por %p90, %p91
      %p94 = scmp.ne.s32.totalorder %s77, %s93
      %p95 = scmp.eq.s32.totalorder %s16, 0
      %p96 = por %p94, %p95
      %p97 = scmp.le.s32.totalorder 1, %s10
      %p98 = scmp.lt.s32.totalorder %s10, 3
      %p99 = pnand %p97, %p98
      %p100 = pneg %p99
      // Predicated region
      $region9: #{tpu_custom_call.1} parent=5 // pred_check
        _
      $region10: #{tpu_custom_call.1} parent=5 // pred_check_branch
        %102 = sbr.rel (%p99) target = $region12
      $region11: #{tpu_custom_call.1} parent=5 // pred_region
        %s103 = ssub.s32 %s10, 1
      $region12: #{tpu_custom_call.1} parent=5 // pred_fallthru
        _
      %p104 = scmp.lt.s32.totalorder %s10, 2
      // Predicated region
      $region13: #{tpu_custom_call.1} parent=5 // pred_check
        %p105 = pneg %p104
      $region14: #{tpu_custom_call.1} parent=5 // pred_check_branch
        %107 = sbr.rel (%p105) target = $region16
      $region15: #{tpu_custom_call.1} parent=5 // pred_region
        // Predicated region
        $region17: #{tpu_custom_call.1} parent=15 // pred_check
          %p108 = pneg %p53
        $region18: #{tpu_custom_call.1} parent=15 // pred_check_branch
          %110 = sbr.rel (%p108) target = $region20
        $region19: #{tpu_custom_call.1} parent=15 // pred_region
          %s111 = sand.u32 %s43, 1
          %s112 = scalar_lea.sflag [#allocation3], %s111
          %s113 = sand.u32 %s43, 1
          %s114 = smul.addr %s113, 384
          %s115 = scalar_lea.vmem [#allocation2], %s114
          %s116 = smul.u32 24, %s18
          %s117 = smul.u32 2, %s19
          %s119 = ssub.s32 6144, 6144
          %120 = vsyncadd %s112, %s119
          %s121 = smul.addr %s116, 2
          %s122 = sadd.s32 %s117, %s121
          %s123 = smul.addr %s17, 48
          %s124 = sadd.s32 %s122, %s123
          %s125 = smul.addr %s124, 128
          %s126 = scalar_lea.hbm %s0, %s125
          %s127 = sshll.u32 %s115, 4
          %s128 = int_to_ptr.vmem [resolvable:$true] %s127
          %133 = dma.hbm_to_vmem [thread:$0]  %s126, 6144, %s128, %s112, 256, 256, 16
        $region20: #{tpu_custom_call.1} parent=15 // pred_fallthru
          _
      $region16: #{tpu_custom_call.1} parent=5 // pred_fallthru
        _
      %p134 = scmp.le.s32.totalorder 1, %s10
      %p135 = scmp.lt.s32.totalorder %s10, 3
      %p136 = pnand %p134, %p135
      %p137 = pneg %p136
      // Predicated region
      $region21: #{tpu_custom_call.1} parent=5 // pred_check
        _
      $region22: #{tpu_custom_call.1} parent=5 // pred_check_branch
        %139 = sbr.rel (%p136) target = $region24
      $region23: #{tpu_custom_call.1} parent=5 // pred_region
        %s140 = ssub.s32 %s10, 1
        %s141 = sand.u32 %s46, 1
        %s142 = scalar_lea.sflag [#allocation3], %s141
        %s143 = sand.u32 %s46, 1
        %s144 = smul.addr %s143, 384
        %s145 = scalar_lea.vmem [#allocation2], %s144
        // Predicated region
        $region25: #{tpu_custom_call.1} parent=23 // pred_check
          %p146 = pneg %p59
        $region26: #{tpu_custom_call.1} parent=23 // pred_check_branch
          %148 = sbr.rel (%p146) target = $region28
        $region27: #{tpu_custom_call.1} parent=23 // pred_region
          %149 = dma.done %s142, 6144
        $region28: #{tpu_custom_call.1} parent=23 // pred_fallthru
          _
        %s150 = sand.u32 %s46, 1
        %s151 = scalar_lea.sflag [#allocation3], %s150
        %s152 = sand.u32 %s46, 1
        %s153 = smul.addr %s152, 384
        %s154 = scalar_lea.vmem [#allocation2], %s153
        %p155 = pneg %p59
        %p156 = pneg %p56
        %p157 = pneg %p89
        %p158 = pneg %p86
        %s159 = smul.u32 25, %s22
        %s160 = smul.u32 2, %s21
        %p161 = scmp.lt.s32.totalorder %s20, 1
        %s162 = scalar_select %p161, %s20, 1
        %p163 = scmp.lt.s32.totalorder %s159, 24
        %s164 = scalar_select %p163, %s159, 24
        %p165 = scmp.lt.s32.totalorder %s160, 1
        %s166 = scalar_select %p165, %s160, 1
        %s167 = smul.addr %s164, 2
        %s168 = sadd.s32 %s166, %s167
        %s169 = smul.addr %s162, 50
        %s170 = sadd.s32 %s168, %s169
        %s171 = smul.addr %s170, 8
        %s172 = scalar_lea.vmem %s1, %s171
        %s173 = smul.u32 24, %s21
        %s174 = smul.u32 2, %s22
        %s175 = smul.u32 25, %s22
        %s176 = smul.u32 2, %s21
        %p177 = scmp.lt.s32.totalorder %s20, 1
        %s178 = scalar_select %p177, %s20, 1
        %p179 = scmp.lt.s32.totalorder %s175, 24
        %s180 = scalar_select %p179, %s175, 24
        %p181 = scmp.lt.s32.totalorder %s176, 1
        %s182 = scalar_select %p181, %s176, 1
        %s183 = smul.addr %s180, 2
        %s184 = sadd.s32 %s182, %s183
        %s185 = smul.addr %s178, 50
        %s186 = sadd.s32 %s184, %s185
        %s187 = smul.addr %s186, 8
        %s188 = scalar_lea.vmem %s1, %s187
        %s189 = smul.u32 25, %s22
        %s190 = smul.u32 2, %s21
        %v191 = vld [vmem:[%s145] sm:$0xff]
        %v192 = vld [vmem:[%s145 + $0x8] sm:$0xff]
        %v193 = vld [vmem:[%s145 + $0x10] sm:$0xff]
        %v194 = vld [vmem:[%s145 + $0x18] sm:$0xff]
        %v195 = vld [vmem:[%s145 + $0x20] sm:$0xff]
        %v196 = vld [vmem:[%s145 + $0x28] sm:$0xff]
        %v197 = vld [vmem:[%s145 + $0x30] sm:$0xff]
        %v198 = vld [vmem:[%s145 + $0x38] sm:$0xff]
        %v199 = vld [vmem:[%s145 + $0x40] sm:$0xff]
        %v200 = vld [vmem:[%s145 + $0x48] sm:$0xff]
        %v201 = vld [vmem:[%s145 + $0x50] sm:$0xff]
        %v202 = vld [vmem:[%s145 + $0x58] sm:$0xff]
        %v203 = vld [vmem:[%s145 + $0x60] sm:$0xff]
        %v204 = vld [vmem:[%s145 + $0x68] sm:$0xff]
        %v205 = vld [vmem:[%s145 + $0x70] sm:$0xff]
        %v206 = vld [vmem:[%s145 + $0x78] sm:$0xff]
        %v207 = vld [vmem:[%s145 + $0x80] sm:$0xff]
        %v208 = vld [vmem:[%s145 + $0x88] sm:$0xff]
        %v209 = vld [vmem:[%s145 + $0x90] sm:$0xff]
        %v210 = vld [vmem:[%s145 + $0x98] sm:$0xff]
        %v211 = vld [vmem:[%s145 + $0xa0] sm:$0xff]
        %v212 = vld [vmem:[%s145 + $0xa8] sm:$0xff]
        %v213 = vld [vmem:[%s145 + $0xb0] sm:$0xff]
        %v214 = vld [vmem:[%s145 + $0xb8] sm:$0xff]
        %v215 = vld [vmem:[%s145 + $0xc0] sm:$0xff]
        %v216 = vld [vmem:[%s145 + $0xc8] sm:$0xff]
        %v217 = vld [vmem:[%s145 + $0xd0] sm:$0xff]
        %v218 = vld [vmem:[%s145 + $0xd8] sm:$0xff]
        %v219 = vld [vmem:[%s145 + $0xe0] sm:$0xff]
        %v220 = vld [vmem:[%s145 + $0xe8] sm:$0xff]
        %v221 = vld [vmem:[%s145 + $0xf0] sm:$0xff]
        %v222 = vld [vmem:[%s145 + $0xf8] sm:$0xff]
        %v223 = vld [vmem:[%s145 + $0x100] sm:$0xff]
        %v224 = vld [vmem:[%s145 + $0x108] sm:$0xff]
        %v225 = vld [vmem:[%s145 + $0x110] sm:$0xff]
        %v226 = vld [vmem:[%s145 + $0x118] sm:$0xff]
        %v227 = vld [vmem:[%s145 + $0x120] sm:$0xff]
        %v228 = vld [vmem:[%s145 + $0x128] sm:$0xff]
        %v229 = vld [vmem:[%s145 + $0x130] sm:$0xff]
        %v230 = vld [vmem:[%s145 + $0x138] sm:$0xff]
        %v231 = vld [vmem:[%s145 + $0x140] sm:$0xff]
        %v232 = vld [vmem:[%s145 + $0x148] sm:$0xff]
        %v233 = vld [vmem:[%s145 + $0x150] sm:$0xff]
        %v234 = vld [vmem:[%s145 + $0x158] sm:$0xff]
        %v235 = vld [vmem:[%s145 + $0x160] sm:$0xff]
        %v236 = vld [vmem:[%s145 + $0x168] sm:$0xff]
        %v237 = vld [vmem:[%s145 + $0x170] sm:$0xff]
        %v238 = vld [vmem:[%s145 + $0x178] sm:$0xff]
        %239 = vxpose.xlu0.b32.start [1/16] %v191, 128
        %240 = vxpose.xlu0.b32.cont [2/16] %v193, 128
        %241 = vxpose.xlu0.b32.cont [3/16] %v195, 128
        %242 = vxpose.xlu0.b32.cont [4/16] %v197, 128
        %243 = vxpose.xlu0.b32.cont [5/16] %v199, 128
        %244 = vxpose.xlu0.b32.cont [6/16] %v201, 128
        %245 = vxpose.xlu0.b32.cont [7/16] %v203, 128
        %246 = vxpose.xlu0.b32.cont [8/16] %v205, 128
        %247 = vxpose.xlu0.b32.cont [9/16] %v207, 128
        %248 = vxpose.xlu0.b32.cont [10/16] %v209, 128
        %249 = vxpose.xlu0.b32.cont [11/16] %v211, 128
        %250 = vxpose.xlu0.b32.cont [12/16] %v213, 128
        %251 = vxpose.xlu0.b32.cont [13/16] %v215, 128
        %252 = vxpose.xlu0.b32.cont [14/16] %v217, 128
        %253 = vxpose.xlu0.b32.cont [15/16] %v219, 128
        %254 = vxpose.xlu0.b32.end [16/16] %v221, 128
        %v255 = vpop.trf.xlu0
        %v256 = vpop.trf.xlu0
        %v257 = vpop.trf.xlu0
        %v258 = vpop.trf.xlu0
        %v259 = vpop.trf.xlu0
        %v260 = vpop.trf.xlu0
        %v261 = vpop.trf.xlu0
        %v262 = vpop.trf.xlu0
        %v263 = vpop.trf.xlu0
        %v264 = vpop.trf.xlu0
        %v265 = vpop.trf.xlu0
        %v266 = vpop.trf.xlu0
        %v267 = vpop.trf.xlu0
        %v268 = vpop.trf.xlu0
        %v269 = vpop.trf.xlu0
        %v270 = vpop.trf.xlu0
        %271 = vxpose.xlu0.b32.start [1/16] %v192, 128
        %272 = vxpose.xlu0.b32.cont [2/16] %v194, 128
        %273 = vxpose.xlu0.b32.cont [3/16] %v196, 128
        %274 = vxpose.xlu0.b32.cont [4/16] %v198, 128
        %275 = vxpose.xlu0.b32.cont [5/16] %v200, 128
        %276 = vxpose.xlu0.b32.cont [6/16] %v202, 128
        %277 = vxpose.xlu0.b32.cont [7/16] %v204, 128
        %278 = vxpose.xlu0.b32.cont [8/16] %v206, 128
        %279 = vxpose.xlu0.b32.cont [9/16] %v208, 128
        %280 = vxpose.xlu0.b32.cont [10/16] %v210, 128
        %281 = vxpose.xlu0.b32.cont [11/16] %v212, 128
        %282 = vxpose.xlu0.b32.cont [12/16] %v214, 128
        %283 = vxpose.xlu0.b32.cont [13/16] %v216, 128
        %284 = vxpose.xlu0.b32.cont [14/16] %v218, 128
        %285 = vxpose.xlu0.b32.cont [15/16] %v220, 128
        %286 = vxpose.xlu0.b32.end [16/16] %v222, 128
        %v287 = vpop.trf.xlu0
        %v288 = vpop.trf.xlu0
        %v289 = vpop.trf.xlu0
        %v290 = vpop.trf.xlu0
        %v291 = vpop.trf.xlu0
        %v292 = vpop.trf.xlu0
        %v293 = vpop.trf.xlu0
        %v294 = vpop.trf.xlu0
        %v295 = vpop.trf.xlu0
        %v296 = vpop.trf.xlu0
        %v297 = vpop.trf.xlu0
        %v298 = vpop.trf.xlu0
        %v299 = vpop.trf.xlu0
        %v300 = vpop.trf.xlu0
        %v301 = vpop.trf.xlu0
        %v302 = vpop.trf.xlu0
        %303 = vxpose.xlu0.b32.start [1/16] %v223, 128
        %304 = vxpose.xlu0.b32.cont [2/16] %v225, 128
        %305 = vxpose.xlu0.b32.cont [3/16] %v227, 128
        %306 = vxpose.xlu0.b32.cont [4/16] %v229, 128
        %307 = vxpose.xlu0.b32.cont [5/16] %v231, 128
        %308 = vxpose.xlu0.b32.cont [6/16] %v233, 128
        %309 = vxpose.xlu0.b32.cont [7/16] %v235, 128
        %310 = vxpose.xlu0.b32.cont [8/16] %v237, 128
        %311 = vxpose.xlu0.b32.cont [9/16] 0.0, 128
        %312 = vxpose.xlu0.b32.cont [10/16] 0.0, 128
        %313 = vxpose.xlu0.b32.cont [11/16] 0.0, 128
        %314 = vxpose.xlu0.b32.cont [12/16] 0.0, 128
        %315 = vxpose.xlu0.b32.cont [13/16] 0.0, 128
        %316 = vxpose.xlu0.b32.cont [14/16] 0.0, 128
        %317 = vxpose.xlu0.b32.cont [15/16] 0.0, 128
        %318 = vxpose.xlu0.b32.end [16/16] 0.0, 128
        %v319 = vpop.trf.xlu0
        %v320 = vpop.trf.xlu0
        %v321 = vpop.trf.xlu0
        %v322 = vpop.trf.xlu0
        %v323 = vpop.trf.xlu0
        %v324 = vpop.trf.xlu0
        %v325 = vpop.trf.xlu0
        %v326 = vpop.trf.xlu0
        %v327 = vpop.trf.xlu0
        %v328 = vpop.trf.xlu0
        %v329 = vpop.trf.xlu0
        %v330 = vpop.trf.xlu0
        %v331 = vpop.trf.xlu0
        %v332 = vpop.trf.xlu0
        %v333 = vpop.trf.xlu0
        %v334 = vpop.trf.xlu0
        %335 = vxpose.xlu0.b32.start [1/16] %v224, 128
        %336 = vxpose.xlu0.b32.cont [2/16] %v226, 128
        %337 = vxpose.xlu0.b32.cont [3/16] %v228, 128
        %338 = vxpose.xlu0.b32.cont [4/16] %v230, 128
        %339 = vxpose.xlu0.b32.cont [5/16] %v232, 128
        %340 = vxpose.xlu0.b32.cont [6/16] %v234, 128
        %341 = vxpose.xlu0.b32.cont [7/16] %v236, 128
        %342 = vxpose.xlu0.b32.cont [8/16] %v238, 128
        %343 = vxpose.xlu0.b32.cont [9/16] 0.0, 128
        %344 = vxpose.xlu0.b32.cont [10/16] 0.0, 128
        %345 = vxpose.xlu0.b32.cont [11/16] 0.0, 128
        %346 = vxpose.xlu0.b32.cont [12/16] 0.0, 128
        %347 = vxpose.xlu0.b32.cont [13/16] 0.0, 128
        %348 = vxpose.xlu0.b32.cont [14/16] 0.0, 128
        %349 = vxpose.xlu0.b32.cont [15/16] 0.0, 128
        %350 = vxpose.xlu0.b32.end [16/16] 0.0, 128
        %v351 = vpop.trf.xlu0
        %v352 = vpop.trf.xlu0
        %v353 = vpop.trf.xlu0
        %v354 = vpop.trf.xlu0
        %v355 = vpop.trf.xlu0
        %v356 = vpop.trf.xlu0
        %v357 = vpop.trf.xlu0
        %v358 = vpop.trf.xlu0
        %v359 = vpop.trf.xlu0
        %v360 = vpop.trf.xlu0
        %v361 = vpop.trf.xlu0
        %v362 = vpop.trf.xlu0
        %v363 = vpop.trf.xlu0
        %v364 = vpop.trf.xlu0
        %v365 = vpop.trf.xlu0
        %v366 = vpop.trf.xlu0
        %367 = vst [vmem:[%s188] sm:$0xff] %v255
        %vm368 = vcmask 523264
        %369 = vst.msk [vmem:[%s188 + $0x8] sm:$0xff] %vm368, %v319
        %370 = vst [vmem:[%s188 + $0x10] sm:$0xff] %v256
        %371 = vst.msk [vmem:[%s188 + $0x18] sm:$0xff] %vm368, %v320
        %372 = vst [vmem:[%s188 + $0x20] sm:$0xff] %v257
        %373 = vst.msk [vmem:[%s188 + $0x28] sm:$0xff] %vm368, %v321
        %374 = vst [vmem:[%s188 + $0x30] sm:$0xff] %v258
        %375 = vst.msk [vmem:[%s188 + $0x38] sm:$0xff] %vm368, %v322
        %376 = vst [vmem:[%s188 + $0x40] sm:$0xff] %v259
        %377 = vst.msk [vmem:[%s188 + $0x48] sm:$0xff] %vm368, %v323
        %378 = vst [vmem:[%s188 + $0x50] sm:$0xff] %v260
        %379 = vst.msk [vmem:[%s188 + $0x58] sm:$0xff] %vm368, %v324
        %380 = vst [vmem:[%s188 + $0x60] sm:$0xff] %v261
        %381 = vst.msk [vmem:[%s188 + $0x68] sm:$0xff] %vm368, %v325
        %382 = vst [vmem:[%s188 + $0x70] sm:$0xff] %v262
        %383 = vst.msk [vmem:[%s188 + $0x78] sm:$0xff] %vm368, %v326
        %384 = vst [vmem:[%s188 + $0x80] sm:$0xff] %v263
        %385 = vst.msk [vmem:[%s188 + $0x88] sm:$0xff] %vm368, %v327
        %386 = vst [vmem:[%s188 + $0x90] sm:$0xff] %v264
        %387 = vst.msk [vmem:[%s188 + $0x98] sm:$0xff] %vm368, %v328
        %388 = vst [vmem:[%s188 + $0xa0] sm:$0xff] %v265
        %389 = vst.msk [vmem:[%s188 + $0xa8] sm:$0xff] %vm368, %v329
        %390 = vst [vmem:[%s188 + $0xb0] sm:$0xff] %v266
        %391 = vst.msk [vmem:[%s188 + $0xb8] sm:$0xff] %vm368, %v330
        %392 = vst [vmem:[%s188 + $0xc0] sm:$0xff] %v267
        %393 = vst.msk [vmem:[%s188 + $0xc8] sm:$0xff] %vm368, %v331
        %394 = vst [vmem:[%s188 + $0xd0] sm:$0xff] %v268
        %395 = vst.msk [vmem:[%s188 + $0xd8] sm:$0xff] %vm368, %v332
        %396 = vst [vmem:[%s188 + $0xe0] sm:$0xff] %v269
        %397 = vst.msk [vmem:[%s188 + $0xe8] sm:$0xff] %vm368, %v333
        %398 = vst [vmem:[%s188 + $0xf0] sm:$0xff] %v270
        %399 = vst.msk [vmem:[%s188 + $0xf8] sm:$0xff] %vm368, %v334
        %400 = vst [vmem:[%s188 + $0x100] sm:$0xff] %v287
        %401 = vst.msk [vmem:[%s188 + $0x108] sm:$0xff] %vm368, %v351
        %402 = vst [vmem:[%s188 + $0x110] sm:$0xff] %v288
        %403 = vst.msk [vmem:[%s188 + $0x118] sm:$0xff] %vm368, %v352
        %404 = vst [vmem:[%s188 + $0x120] sm:$0xff] %v289
        %405 = vst.msk [vmem:[%s188 + $0x128] sm:$0xff] %vm368, %v353
        %406 = vst [vmem:[%s188 + $0x130] sm:$0xff] %v290
        %407 = vst.msk [vmem:[%s188 + $0x138] sm:$0xff] %vm368, %v354
        %408 = vst [vmem:[%s188 + $0x140] sm:$0xff] %v291
        %409 = vst.msk [vmem:[%s188 + $0x148] sm:$0xff] %vm368, %v355
        %410 = vst [vmem:[%s188 + $0x150] sm:$0xff] %v292
        %411 = vst.msk [vmem:[%s188 + $0x158] sm:$0xff] %vm368, %v356
        %412 = vst [vmem:[%s188 + $0x160] sm:$0xff] %v293
        %413 = vst.msk [vmem:[%s188 + $0x168] sm:$0xff] %vm368, %v357
        %414 = vst [vmem:[%s188 + $0x170] sm:$0xff] %v294
        %415 = vst.msk [vmem:[%s188 + $0x178] sm:$0xff] %vm368, %v358
        %416 = vst [vmem:[%s188 + $0x180] sm:$0xff] %v295
        %417 = vst.msk [vmem:[%s188 + $0x188] sm:$0xff] %vm368, %v359
        %s418 = smul.u32 25, %s22
        %s419 = smul.u32 2, %s21
        %p420 = scmp.lt.s32.totalorder %s20, 1
        %s421 = scalar_select %p420, %s20, 1
        %p422 = scmp.lt.s32.totalorder %s418, 24
        %s423 = scalar_select %p422, %s418, 24
        %p424 = scmp.lt.s32.totalorder %s419, 1
        %s425 = scalar_select %p424, %s419, 1
        %s426 = smul.addr %s423, 2
        %s427 = sadd.s32 %s425, %s426
        %s428 = smul.addr %s421, 50
        %s429 = sadd.s32 %s427, %s428
        %s430 = smul.addr %s429, 8
        %s431 = scalar_lea.vmem %s1, %s430
        // Predicated region
        $region29: #{tpu_custom_call.1} parent=23 // pred_check
          %p432 = pneg %p86
        $region30: #{tpu_custom_call.1} parent=23 // pred_check_branch
          %434 = sbr.rel (%p432) target = $region32
        $region31: #{tpu_custom_call.1} parent=23 // pred_region
          %s435 = smul.u32 25, %s22
          %s436 = smul.u32 2, %s21
        $region32: #{tpu_custom_call.1} parent=23 // pred_fallthru
          _
      $region24: #{tpu_custom_call.1} parent=5 // pred_fallthru
        _
      %p437 = scmp.le.s32.totalorder 2, %s10
      // Predicated region
      $region33: #{tpu_custom_call.1} parent=5 // pred_check
        %p438 = pneg %p437
      $region34: #{tpu_custom_call.1} parent=5 // pred_check_branch
        %440 = sbr.rel (%p438) target = $region36
      $region35: #{tpu_custom_call.1} parent=5 // pred_region
        %s441 = ssub.s32 %s10, 2
        // Predicated region
        $region37: #{tpu_custom_call.1} parent=35 // pred_check
          %p442 = pneg %p92
        $region38: #{tpu_custom_call.1} parent=35 // pred_check_branch
          %444 = sbr.rel (%p442) target = $region40
        $region39: #{tpu_custom_call.1} parent=35 // pred_region
          %s445 = smul.u32 25, %s25
          %s446 = smul.u32 2, %s24
          %p447 = scmp.lt.s32.totalorder %s23, 1
          %s448 = scalar_select %p447, %s23, 1
          %p449 = scmp.lt.s32.totalorder %s445, 24
          %s450 = scalar_select %p449, %s445, 24
          %p451 = scmp.lt.s32.totalorder %s446, 1
          %s452 = scalar_select %p451, %s446, 1
          %s453 = smul.addr %s450, 2
          %s454 = sadd.s32 %s452, %s453
          %s455 = smul.addr %s448, 50
          %s456 = sadd.s32 %s454, %s455
          %s457 = smul.addr %s456, 8
          %s458 = scalar_lea.vmem %s1, %s457
        $region40: #{tpu_custom_call.1} parent=35 // pred_fallthru
          _
      $region36: #{tpu_custom_call.1} parent=5 // pred_fallthru
        _
    $region6: #{tpu_custom_call.1} parent=1 // loop_footer
      %s14 = sadd.s32 1, %s10
    $region7: #{tpu_custom_call.1} parent=1 // loop_footer_branch
      %9 = sbr.rel target = $region3
    $region8: #{tpu_custom_call.1} parent=1 // loop_exit
      _
    %459 = vsyncpa [#allocation3], 1
    %s460 = scalar_lea.sflag [#allocation3], 1
    %461 = vsyncpa %s460, 1

</llo_original>
